<compile_context>
chip_gen: v7x
topology: tpu7x:2x2x1
jax: 0.10.0
libtpu: 0.0.40
codegen_flags: <defaults>
</compile_context>

<pallas_src>
import jax
import jax.numpy as jnp
from jax.experimental import pallas as pl
from jax.experimental.pallas import tpu as pltpu

BN_EPS = 1e-5
_VMEM_LIMIT = 48 * 1024 * 1024  # below v7x's 64 MiB physical VMEM


# --------------------------------------------------------------------------
# Pass 1: psum[b, o] += sum_hw_tile( relu(W_sp^T @ fsp + W_cp^T @ fcp + b) )
# (BN folded into W, b.)  Only the pooled sums go to HBM.
# --------------------------------------------------------------------------
def _psum_kernel(fsp_ref, fcp_ref, wsp_ref, wcp_ref, bias_ref, psum_ref):
    # fsp_ref: (1, Csp, hw_tile)  fcp_ref: (1, Ccp, hw_tile)
    # wsp_ref: (Cout, Csp) bf16   wcp_ref: (Cout, Ccp) bf16   bias: (Cout, 1) f32
    xsp = fsp_ref[0].astype(wsp_ref.dtype)   # cast in VMEM (cheap VPU op)
    xcp = fcp_ref[0].astype(wcp_ref.dtype)
    acc = jnp.dot(wsp_ref[...], xsp, preferred_element_type=jnp.float32)
    acc = acc + jnp.dot(wcp_ref[...], xcp, preferred_element_type=jnp.float32)
    feat = jnp.maximum(acc + bias_ref[...], 0.0)            # f32 (Cout, hw_tile)
    partial = jnp.sum(feat, axis=1, keepdims=True)          # (Cout, 1)

    @pl.when(pl.program_id(2) == 0)
    def _():
        psum_ref[...] = jnp.zeros_like(psum_ref)

    psum_ref[0, 0] = psum_ref[0, 0] + partial


# --------------------------------------------------------------------------
# Pass 2: recompute feat tile and apply out = feat * (atten + 1).
# scale = (sigmoid(attention) + 1) is precomputed in JAX, shape (N, Cout, 1).
# --------------------------------------------------------------------------
def _fuse_kernel(fsp_ref, fcp_ref, wsp_ref, wcp_ref, bias_ref, scale_ref,
                 o_ref):
    xsp = fsp_ref[0].astype(wsp_ref.dtype)
    xcp = fcp_ref[0].astype(wcp_ref.dtype)
    acc = jnp.dot(wsp_ref[...], xsp, preferred_element_type=jnp.float32)
    acc = acc + jnp.dot(wcp_ref[...], xcp, preferred_element_type=jnp.float32)
    feat = jnp.maximum(acc + bias_ref[...], 0.0)             # f32
    o_ref[0] = (feat * scale_ref[0]).astype(o_ref.dtype)     # bf16 store


def feature_fusion_forward(fsp, fcp, params, *, hw_tile=None,
                           compute_dtype=jnp.bfloat16, out_dtype=None):
    """fsp, fcp: NCHW arrays with identical spatial sizes."""
    w1, gamma, beta, rmean, rvar, wa1, wa2 = params
    n, c_sp, h, w = fsp.shape
    c_cp = fcp.shape[1]
    cout = w1.shape[1]
    hw = h * w
    out_dtype = compute_dtype if out_dtype is None else out_dtype

    # TODO(synk): bilinear (align_corners=True) resize of fcp when the spatial
    # sizes differ is not implemented.
    assert fcp.shape[2:] == (h, w), "unequal spatial sizes not supported"

    # Pad HW up to a multiple of 128 so stores stay lane-dense and tiles fit
    # the (8, 128) constraint regardless of image size.
    hw_pad = ((hw + 127) // 128) * 128
    if hw_tile is None:
        for cand in (4096, 2048, 1024, 512, 256, 128):   # v7x-safe cap (bf16)
            if hw_pad % cand == 0:
                hw_tile = cand
                break
    assert hw_pad % hw_tile == 0 and hw_tile % 128 == 0
    n_tiles = hw_pad // hw_tile
    # v7x megacore: the two TensorCores each take half the HW tiles of pass 1.
    n_outer = 2 if n_tiles % 2 == 0 else 1
    n_inner = n_tiles // n_outer

    # ---- fold BatchNorm (eval mode) into the 1x1 conv ---------------------
    bn_scale = gamma[0] * jax.lax.rsqrt(rvar[0] + BN_EPS)            # (Cout,)
    w_fold = w1 * bn_scale[None, :]                                  # (Cin, Cout)
    b_fold = (beta[0] - rmean[0] * bn_scale).reshape(cout, 1)        # (Cout, 1)
    b_fold = b_fold.astype(jnp.float32)

    # Channel-major weights (Cout, Cin) split so fcat is never materialised.
    wsp_t = jnp.transpose(w_fold[:c_sp]).astype(compute_dtype)       # (Cout, Csp)
    wcp_t = jnp.transpose(w_fold[c_sp:]).astype(compute_dtype)       # (Cout, Ccp)

    # NCHW -> (N, C, HW): pure reshape, ORIGINAL dtype (cast happens in VMEM).
    x_sp = fsp.reshape(n, c_sp, hw)
    x_cp = fcp.reshape(n, c_cp, hw)
    if hw_pad != hw:
        pad = ((0, 0), (0, 0), (0, hw_pad - hw))
        x_sp = jnp.pad(x_sp, pad)
        x_cp = jnp.pad(x_cp, pad)

    # ---- pass 1: per-batch pooled sums (no feat round trip) ---------------
    psum = pl.pallas_call(
        _psum_kernel,
        out_shape=jax.ShapeDtypeStruct((n, n_outer, cout, 1), jnp.float32),
        grid_spec=pltpu.PrefetchScalarGridSpec(
            num_scalar_prefetch=0,
            grid=(n, n_outer, n_inner),
            in_specs=[
                pl.BlockSpec((1, c_sp, hw_tile),
                             lambda b, o, t: (b, 0, o * n_inner + t)),
                pl.BlockSpec((1, c_cp, hw_tile),
                             lambda b, o, t: (b, 0, o * n_inner + t)),
                pl.BlockSpec((cout, c_sp), lambda b, o, t: (0, 0)),
                pl.BlockSpec((cout, c_cp), lambda b, o, t: (0, 0)),
                pl.BlockSpec((cout, 1), lambda b, o, t: (0, 0)),
            ],
            out_specs=pl.BlockSpec((1, 1, cout, 1),
                                   lambda b, o, t: (b, o, 0, 0)),
        ),
        compiler_params=pltpu.CompilerParams(
            dimension_semantics=("parallel", "parallel", "arbitrary"),
            vmem_limit_bytes=_VMEM_LIMIT),
    )(x_sp, x_cp, wsp_t, wcp_t, b_fold)

    # ---- attention MLP in plain JAX (tiny (N, Cout) matvecs) --------------
    pooled_sum = jnp.sum(psum[..., 0], axis=1)                       # (N, Cout)
    if hw_pad != hw:
        # Zero-padded columns contribute exactly relu(bias) per channel.
        pooled_sum = pooled_sum - (hw_pad - hw) * jnp.maximum(b_fold[:, 0], 0.0)
    pooled = pooled_sum / float(hw)                                  # avg pool
    a = jnp.maximum(pooled @ wa1, 0.0)                               # (N, Cout//4)
    a = jax.nn.sigmoid(a @ wa2)                                      # (N, Cout)
    # feat*atten + feat == feat * (atten + 1)
    scale = (1.0 + a)[..., None].astype(jnp.float32)                 # (N, Cout, 1)

    # ---- pass 2: recompute feat tiles, scale, store ------------------------
    out = pl.pallas_call(
        _fuse_kernel,
        out_shape=jax.ShapeDtypeStruct((n, cout, hw_pad), out_dtype),
        grid_spec=pltpu.PrefetchScalarGridSpec(
            num_scalar_prefetch=0,
            grid=(n, n_tiles),
            in_specs=[
                pl.BlockSpec((1, c_sp, hw_tile), lambda b, t: (b, 0, t)),
                pl.BlockSpec((1, c_cp, hw_tile), lambda b, t: (b, 0, t)),
                pl.BlockSpec((cout, c_sp), lambda b, t: (0, 0)),
                pl.BlockSpec((cout, c_cp), lambda b, t: (0, 0)),
                pl.BlockSpec((cout, 1), lambda b, t: (0, 0)),
                pl.BlockSpec((1, cout, 1), lambda b, t: (b, 0, 0)),
            ],
            out_specs=pl.BlockSpec((1, cout, hw_tile), lambda b, t: (b, 0, t)),
        ),
        compiler_params=pltpu.CompilerParams(
            dimension_semantics=("parallel", "parallel"),
            vmem_limit_bytes=_VMEM_LIMIT),
    )(x_sp, x_cp, wsp_t, wcp_t, b_fold, scale)

    if hw_pad != hw:
        out = out[:, :, :hw]
    return out.reshape(n, cout, h, w)


def make_params(key, in_chan, out_chan):
    """Deterministic synthetic params (kaiming-like scale for conv weights)."""
    k1, k2, k3, k4, k5 = jax.random.split(key, 5)
    # conv weights stored as (Cin, Cout); the wrapper transposes for the kernel
    w1 = jax.random.normal(k1, (in_chan, out_chan), jnp.float32) * (
        2.0 / in_chan) ** 0.5
    wa1 = jax.random.normal(k2, (out_chan, out_chan // 4), jnp.float32) * (
        2.0 / out_chan) ** 0.5
    wa2 = jax.random.normal(k3, (out_chan // 4, out_chan), jnp.float32) * (
        2.0 / (out_chan // 4)) ** 0.5
    gamma = 1.0 + 0.1 * jax.random.normal(k4, (1, out_chan), jnp.float32)
    beta = 0.1 * jax.random.normal(k5, (1, out_chan), jnp.float32)
    rmean = jnp.zeros((1, out_chan), jnp.float32)
    rvar = jnp.ones((1, out_chan), jnp.float32)
    return (w1, gamma, beta, rmean, rvar, wa1, wa2)


def reference_forward(fsp, fcp, params):
    """Pure-JAX reference (same math as the PyTorch module, NCHW in/out)."""
    w1, gamma, beta, rmean, rvar, wa1, wa2 = params
    x = jnp.concatenate([fsp, fcp], axis=1)                     # NCHW
    x = jnp.transpose(x, (0, 2, 3, 1))                          # NHWC
    feat = jnp.einsum("nhwc,cd->nhwd", x, w1)
    feat = (feat - rmean[0]) * (gamma[0] / jnp.sqrt(rvar[0] + BN_EPS)) + beta[0]
    feat = jnp.maximum(feat, 0.0)
    pooled = jnp.mean(feat, axis=(1, 2))                        # (N, Cout)
    a = jnp.maximum(pooled @ wa1, 0.0)
    a = jax.nn.sigmoid(a @ wa2)                                 # (N, Cout)
    out = feat * a[:, None, None, :] + feat
    return jnp.transpose(out, (0, 3, 1, 2))


if __name__ == "__main__":
    # small shapes: batch=2, fsp/fcp channels=4 each -> in_chan=8, out_chan=16
    key = jax.random.PRNGKey(0)
    k_sp, k_cp, k_p = jax.random.split(key, 3)
    N, Csp, Ccp, H, W = 2, 4, 4, 32, 32
    in_chan, out_chan = Csp + Ccp, 16

    fsp = jax.random.normal(k_sp, (N, Csp, H, W), jnp.float32)
    fcp = jax.random.normal(k_cp, (N, Ccp, H, W), jnp.float32)
    params = make_params(k_p, in_chan, out_chan)

    ref = jax.block_until_ready(reference_forward(fsp, fcp, params))

    # hw_tile=128 -> 8 HW tiles / image: exercises both the outer (parallel)
    # HW split and the inner cross-tile pooled-sum accumulation.
    # f32 path: tight check of the math.
    out_f32 = feature_fusion_forward(fsp, fcp, params, hw_tile=128,
                                     compute_dtype=jnp.float32)
    out_f32 = jax.block_until_ready(out_f32)
    assert out_f32.shape == (N, out_chan, H, W), out_f32.shape
    err_f32 = float(jnp.max(jnp.abs(out_f32.astype(jnp.float32) - ref)))
    assert jnp.allclose(out_f32.astype(jnp.float32), ref,
                        atol=1e-3, rtol=1e-3), err_f32

    # default bf16 path (bf16 MXU operands + bf16 HBM stores): looser tol.
    out_bf16 = feature_fusion_forward(fsp, fcp, params, hw_tile=128)
    out_bf16 = jax.block_until_ready(out_bf16).astype(jnp.float32)
    err_bf16 = float(jnp.max(jnp.abs(out_bf16 - ref)))
    assert jnp.allclose(out_bf16, ref, atol=6e-2, rtol=6e-2), err_bf16

    print("KERNEL_OK")
</pallas_src>

<mosaic_0001>
module attributes {stable_mosaic.version = 11 : i64} {
  func.func @_psum_kernel(%arg0: i32, %arg1: i32, %arg2: i32, %arg3: memref<1x4x128xf32, #tpu.memory_space<vmem>>, %arg4: memref<1x4x128xf32, #tpu.memory_space<vmem>>, %arg5: memref<16x4xf32, #tpu.memory_space<vmem>>, %arg6: memref<16x4xf32, #tpu.memory_space<vmem>>, %arg7: memref<16x1xf32, #tpu.memory_space<vmem>>, %arg8: memref<1x1x16x1xf32, #tpu.memory_space<vmem>>) attributes {dimension_semantics = [#tpu.dimension_semantics<parallel>, #tpu.dimension_semantics<parallel>, #tpu.dimension_semantics<arbitrary>], iteration_bounds = array<i64: 2, 2, 4>, scalar_prefetch = 0 : i64, scratch_operands = 0 : i64, tpu.core_type = #tpu.core_type<tc>, window_params = [{transform_indices = @transform_0, window_bounds = array<i64: 1, 4, 128>}, {transform_indices = @transform_1, window_bounds = array<i64: 1, 4, 128>}, {pipeline_mode = #tpu.pipeline_mode<synchronous>, transform_indices = @transform_2, window_bounds = array<i64: 16, 4>}, {pipeline_mode = #tpu.pipeline_mode<synchronous>, transform_indices = @transform_3, window_bounds = array<i64: 16, 4>}, {pipeline_mode = #tpu.pipeline_mode<synchronous>, transform_indices = @transform_4, window_bounds = array<i64: 16, 1>}, {transform_indices = @transform_5, window_bounds = array<i64: 1, 1, 16, 1>}]} {
    %c0 = arith.constant 0 : index
    %c0_0 = arith.constant 0 : index
    %c0_1 = arith.constant 0 : index
    %0 = vector.load %arg3[%c0, %c0_0, %c0_1] : memref<1x4x128xf32, #tpu.memory_space<vmem>>, vector<1x4x128xf32>
    %1 = vector.shape_cast %0 : vector<1x4x128xf32> to vector<4x128xf32>
    %c0_2 = arith.constant 0 : index
    %c0_3 = arith.constant 0 : index
    %c0_4 = arith.constant 0 : index
    %2 = vector.load %arg4[%c0_2, %c0_3, %c0_4] : memref<1x4x128xf32, #tpu.memory_space<vmem>>, vector<1x4x128xf32>
    %3 = vector.shape_cast %2 : vector<1x4x128xf32> to vector<4x128xf32>
    %c0_5 = arith.constant 0 : index
    %c0_6 = arith.constant 0 : index
    %4 = vector.load %arg5[%c0_5, %c0_6] : memref<16x4xf32, #tpu.memory_space<vmem>>, vector<16x4xf32>
    %cst = arith.constant dense<0.000000e+00> : vector<16x128xf32>
    %5 = tpu.matmul %4, %1, %cst {dimension_numbers = #tpu.dot_dimension_numbers<[1], [0], [0], [1], [0, 0, 1, 1], [], []>} : vector<16x4xf32>, vector<4x128xf32>, vector<16x128xf32> -> vector<16x128xf32>
    %c0_7 = arith.constant 0 : index
    %c0_8 = arith.constant 0 : index
    %6 = vector.load %arg6[%c0_7, %c0_8] : memref<16x4xf32, #tpu.memory_space<vmem>>, vector<16x4xf32>
    %cst_9 = arith.constant dense<0.000000e+00> : vector<16x128xf32>
    %7 = tpu.matmul %6, %3, %cst_9 {dimension_numbers = #tpu.dot_dimension_numbers<[1], [0], [0], [1], [0, 0, 1, 1], [], []>} : vector<16x4xf32>, vector<4x128xf32>, vector<16x128xf32> -> vector<16x128xf32>
    %8 = arith.addf %5, %7 : vector<16x128xf32>
    %c0_10 = arith.constant 0 : index
    %c0_11 = arith.constant 0 : index
    %9 = vector.load %arg7[%c0_10, %c0_11] : memref<16x1xf32, #tpu.memory_space<vmem>>, vector<16x1xf32>
    %10 = vector.broadcast %9 : vector<16x1xf32> to vector<16x128xf32>
    %11 = arith.addf %8, %10 : vector<16x128xf32>
    %cst_12 = arith.constant 0.000000e+00 : f32
    %12 = vector.broadcast %cst_12 : f32 to vector<16x128xf32>
    %13 = arith.maximumf %11, %12 : vector<16x128xf32>
    %cst_13 = arith.constant dense<0.000000e+00> : vector<16xf32>
    %14 = vector.multi_reduction <add>, %13, %cst_13 [1] : vector<16x128xf32> to vector<16xf32>
    %15 = vector.shape_cast %14 : vector<16xf32> to vector<16x1xf32>
    %c0_i32 = arith.constant 0 : i32
    %16 = arith.cmpi eq, %arg2, %c0_i32 : i32
    %17 = arith.extui %16 : i1 to i32
    %c0_i32_14 = arith.constant 0 : i32
    %18 = arith.cmpi ne, %17, %c0_i32_14 : i32
    scf.if %18 {
      %cst_23 = arith.constant 0.000000e+00 : f32
      %25 = vector.broadcast %cst_23 : f32 to vector<1x1x16x1xf32>
      %c0_24 = arith.constant 0 : index
      %c0_25 = arith.constant 0 : index
      %c0_26 = arith.constant 0 : index
      %c0_27 = arith.constant 0 : index
      %26 = vector.load %arg8[%c0_24, %c0_25, %c0_26, %c0_27] : memref<1x1x16x1xf32, #tpu.memory_space<vmem>>, vector<1x1x16x1xf32>
      tpu.vector_store %arg8[%c0_24, %c0_25, %c0_26, %c0_27], %25 {strides = array<i32>} : memref<1x1x16x1xf32, #tpu.memory_space<vmem>>, vector<1x1x16x1xf32>,
    } else {
    }
    %c0_15 = arith.constant 0 : index
    %c0_16 = arith.constant 0 : index
    %c0_17 = arith.constant 0 : index
    %c0_18 = arith.constant 0 : index
    %19 = vector.load %arg8[%c0_15, %c0_16, %c0_17, %c0_18] : memref<1x1x16x1xf32, #tpu.memory_space<vmem>>, vector<1x1x16x1xf32>
    %20 = vector.shape_cast %19 : vector<1x1x16x1xf32> to vector<16x1xf32>
    %21 = arith.addf %20, %15 : vector<16x1xf32>
    %c0_19 = arith.constant 0 : index
    %c0_20 = arith.constant 0 : index
    %c0_21 = arith.constant 0 : index
    %c0_22 = arith.constant 0 : index
    %22 = vector.load %arg8[%c0_19, %c0_20, %c0_21, %c0_22] : memref<1x1x16x1xf32, #tpu.memory_space<vmem>>, vector<1x1x16x1xf32>
    %23 = vector.shape_cast %22 : vector<1x1x16x1xf32> to vector<16x1xf32>
    %24 = vector.shape_cast %21 : vector<16x1xf32> to vector<1x1x16x1xf32>
    tpu.vector_store %arg8[%c0_19, %c0_20, %c0_21, %c0_22], %24 {strides = array<i32>} : memref<1x1x16x1xf32, #tpu.memory_space<vmem>>, vector<1x1x16x1xf32>,
    return
  }
  func.func @transform_0(%arg0: i32, %arg1: i32, %arg2: i32) -> (i32, i32, i32) {
    %c4_i32 = arith.constant 4 : i32
    %0 = arith.muli %arg1, %c4_i32 : i32
    %1 = arith.addi %0, %arg2 : i32
    %c0_i32 = arith.constant 0 : i32
    %c0_i32_0 = arith.constant 0 : i32
    return %arg0, %c0_i32, %1 : i32, i32, i32
  }
  func.func @transform_1(%arg0: i32, %arg1: i32, %arg2: i32) -> (i32, i32, i32) {
    %c4_i32 = arith.constant 4 : i32
    %0 = arith.muli %arg1, %c4_i32 : i32
    %1 = arith.addi %0, %arg2 : i32
    %c0_i32 = arith.constant 0 : i32
    %c0_i32_0 = arith.constant 0 : i32
    return %arg0, %c0_i32, %1 : i32, i32, i32
  }
  func.func @transform_2(%arg0: i32, %arg1: i32, %arg2: i32) -> (i32, i32) {
    %c0_i32 = arith.constant 0 : i32
    %c0_i32_0 = arith.constant 0 : i32
    %c0_i32_1 = arith.constant 0 : i32
    return %c0_i32, %c0_i32_0 : i32, i32
  }
  func.func @transform_3(%arg0: i32, %arg1: i32, %arg2: i32) -> (i32, i32) {
    %c0_i32 = arith.constant 0 : i32
    %c0_i32_0 = arith.constant 0 : i32
    %c0_i32_1 = arith.constant 0 : i32
    return %c0_i32, %c0_i32_0 : i32, i32
  }
  func.func @transform_4(%arg0: i32, %arg1: i32, %arg2: i32) -> (i32, i32) {
    %c0_i32 = arith.constant 0 : i32
    %c0_i32_0 = arith.constant 0 : i32
    %c0_i32_1 = arith.constant 0 : i32
    return %c0_i32, %c0_i32_0 : i32, i32
  }
  func.func @transform_5(%arg0: i32, %arg1: i32, %arg2: i32) -> (i32, i32, i32, i32) {
    %c0_i32 = arith.constant 0 : i32
    %c0_i32_0 = arith.constant 0 : i32
    %c0_i32_1 = arith.constant 0 : i32
    return %arg0, %arg1, %c0_i32, %c0_i32_0 : i32, i32, i32, i32
  }
}

</mosaic_0001>

<llo_original>
// kernel: tpu_custom_call.1
$region0: #{tpu_custom_call.1}
  #allocation0 [shape = 'u32[]', space=smem, size = 0x4, offset = 0x4, fixed_abs, tag = 'smem constant byte address 0x4 - core index']
  #allocation1 [shape = 'u32[144,128]{1,0:T(1,128)}', space=vmem, size = 0x12000, scoped, tag = 'internal scratch']
  %s0 = inlined_call_operand.hbm [shape: f32[2,4,1024], index: 0, kind: input, shape index: {}]
  %s1 = inlined_call_operand.hbm [shape: f32[2,4,1024], index: 1, kind: input, shape index: {}]
  %s2 = inlined_call_operand.vmem [shape: f32[16,4], index: 2, kind: input, shape index: {}]
  %s3 = inlined_call_operand.vmem [shape: f32[16,4], index: 3, kind: input, shape index: {}]
  %s4 = inlined_call_operand.vmem [shape: f32[16,1], index: 4, kind: input, shape index: {}]
  %s5 = inlined_call_operand.vmem [shape: f32[2,2,16,1], index: 5, kind: output, shape index: {}]
  %s6 = sld [smem:[#allocation0]]
  $region65: #{tpu_custom_call.1} parent=0
    _
  %s8 = ssub.s32 1, %s6
  %s9 = scalar_select 0, %s8, %s6
  $region1: #{tpu_custom_call.1} parent=0
    #allocation2 [shape = 'u8[4096]{0}', space=vmem, size = 0x1000, scoped, tag = 'input window, operand 0']
    #allocation3 [shape = 's32[2]{0}', space=sflag, size = 0x8, scoped, tag = 'scoped memory for tpu_custom_call.1']
    #allocation4 [shape = 'u8[4096]{0}', space=vmem, size = 0x1000, scoped, tag = 'input window, operand 1']
    #allocation5 [shape = 's32[2]{0}', space=sflag, size = 0x8, scoped, tag = 'scoped memory for tpu_custom_call.1']
    %10 = vsyncpa [#allocation3], 0
    %s11 = scalar_lea.sflag [#allocation3], 1
    %12 = vsyncpa %s11, 0
    %13 = vsyncpa [#allocation5], 0
    %s14 = scalar_lea.sflag [#allocation5], 1
    %15 = vsyncpa %s14, 0
    loop: start=0, step=1, limit=18
    $region2: #{tpu_custom_call.1} parent=1 // loop_pre_header
      _
    $region3: #{tpu_custom_call.1} parent=1 // loop_header
      %s17 = sphi 0, %s21
      %p18 = scmp.ge.s32.totalorder %s17, 18
      %s24 = sphi 0, %s43
      %s25 = sphi 0, %s39
      %s26 = sphi 0, %s35
      %s27 = sphi 0, %s24
      %s28 = sphi 0, %s25
      %s29 = sphi 0, %s26
      %s30 = sphi 0, %s27
      %s31 = sphi 0, %s28
      %s32 = sphi 0, %s29
      %s52 = sphi 0, %s54
      %s55 = sphi 0, %s52
      %s56 = sphi 0, %s55
      %s72 = sphi 0, %s56
      %s84 = sphi 0, %s86
      %s87 = sphi 0, %s84
      %s88 = sphi 0, %s87
      %s104 = sphi 0, %s88
      %s108 = sphi 0, %s108
      %s110 = sphi 0, %s108
      %s111 = sphi 0, %s110
      %s125 = sphi 0, %s111
      %s129 = sphi 0, %s129
      %s131 = sphi 0, %s129
      %s132 = sphi 0, %s131
      %s146 = sphi 0, %s132
      %s150 = sphi 0, %s150
      %s152 = sphi 0, %s150
      %s153 = sphi 0, %s152
      %s167 = sphi 0, %s153
      %s175 = sphi 0, %s177
      %s178 = sphi 0, %s175
      %s179 = sphi 0, %s178
      %s195 = sphi 0, %s179
    $region4: #{tpu_custom_call.1} parent=1 // loop_header_branch
      %20 = sbr.rel (%p18) target = $region8
    $region5: #{tpu_custom_call.1} parent=1 // loop_body
      %s22 = ssub.s32 %s17, 1
      %s23 = ssub.s32 %s17, 2
      %s33 = sadd.s32 1, %s26
      %p34 = scmp.ge.s32.totalorder %s33, 4
      %s35 = scalar_select %p34, 0, %s33
      %s36 = sadd.s32 1, %s25
      %s37 = scalar_select %p34, %s36, %s25
      %p38 = scmp.ge.s32.totalorder %s37, 2
      %s39 = scalar_select %p38, 0, %s37
      %s40 = sadd.s32 1, %s24
      %s41 = scalar_select %p38, %s40, %s24
      %p42 = scmp.ge.s32.totalorder %s41, 2
      %s43 = scalar_select %p42, 0, %s41
      %s44 = smul.u32 %s25, 4
      %s45 = sadd.s32 %s44, %s26
      %s46 = smul.u32 %s39, 4
      %s47 = sadd.s32 %s46, %s35
      %s48 = ssub.s32 %s24, %s43
      %s49 = ssub.s32 %s45, %s47
      %s50 = sor.u32 %s48, %s49
      %p51 = scmp.eq.s32.totalorder %s50, 0
      %s53 = sadd.s32 %s52, 1
      %s54 = scalar_select %p51, %s52, %s53
      %p57 = pneg %p51
      %p58 = scmp.eq.s32.totalorder %s17, 15
      %p59 = por %p57, %p58
      %p60 = scmp.ne.s32.totalorder %s52, %s55
      %p61 = scmp.eq.s32.totalorder %s17, 0
      %p62 = por %p60, %p61
      %p63 = scmp.ne.s32.totalorder %s52, %s55
      %p64 = scmp.eq.s32.totalorder %s22, 15
      %p65 = por %p63, %p64
      %p66 = scmp.ne.s32.totalorder %s55, %s56
      %p67 = scmp.eq.s32.totalorder %s22, 0
      %p68 = por %p66, %p67
      %p69 = scmp.ne.s32.totalorder %s55, %s56
      %p70 = scmp.eq.s32.totalorder %s23, 15
      %p71 = por %p69, %p70
      %p73 = scmp.ne.s32.totalorder %s56, %s72
      %p74 = scmp.eq.s32.totalorder %s23, 0
      %p75 = por %p73, %p74
      %s76 = smul.u32 %s25, 4
      %s77 = sadd.s32 %s76, %s26
      %s78 = smul.u32 %s39, 4
      %s79 = sadd.s32 %s78, %s35
      %s80 = ssub.s32 %s24, %s43
      %s81 = ssub.s32 %s77, %s79
      %s82 = sor.u32 %s80, %s81
      %p83 = scmp.eq.s32.totalorder %s82, 0
      %s85 = sadd.s32 %s84, 1
      %s86 = scalar_select %p83, %s84, %s85
      %p89 = pneg %p83
      %p90 = scmp.eq.s32.totalorder %s17, 15
      %p91 = por %p89, %p90
      %p92 = scmp.ne.s32.totalorder %s84, %s87
      %p93 = scmp.eq.s32.totalorder %s17, 0
      %p94 = por %p92, %p93
      %p95 = scmp.ne.s32.totalorder %s84, %s87
      %p96 = scmp.eq.s32.totalorder %s22, 15
      %p97 = por %p95, %p96
      %p98 = scmp.ne.s32.totalorder %s87, %s88
      %p99 = scmp.eq.s32.totalorder %s22, 0
      %p100 = por %p98, %p99
      %p101 = scmp.ne.s32.totalorder %s87, %s88
      %p102 = scmp.eq.s32.totalorder %s23, 15
      %p103 = por %p101, %p102
      %p105 = scmp.ne.s32.totalorder %s88, %s104
      %p106 = scmp.eq.s32.totalorder %s23, 0
      %p107 = por %p105, %p106
      %s109 = sadd.s32 %s108, 1
      %p112 = scmp.eq.s32.totalorder %s17, 15
      %p113 = scmp.ne.s32.totalorder %s108, %s110
      %p114 = scmp.eq.s32.totalorder %s17, 0
      %p115 = por %p113, %p114
      %p116 = scmp.ne.s32.totalorder %s108, %s110
      %p117 = scmp.eq.s32.totalorder %s22, 15
      %p118 = por %p116, %p117
      %p119 = scmp.ne.s32.totalorder %s110, %s111
      %p120 = scmp.eq.s32.totalorder %s22, 0
      %p121 = por %p119, %p120
      %p122 = scmp.ne.s32.totalorder %s110, %s111
      %p123 = scmp.eq.s32.totalorder %s23, 15
      %p124 = por %p122, %p123
      %p126 = scmp.ne.s32.totalorder %s111, %s125
      %p127 = scmp.eq.s32.totalorder %s23, 0
      %p128 = por %p126, %p127
      %s130 = sadd.s32 %s129, 1
      %p133 = scmp.eq.s32.totalorder %s17, 15
      %p134 = scmp.ne.s32.totalorder %s129, %s131
      %p135 = scmp.eq.s32.totalorder %s17, 0
      %p136 = por %p134, %p135
      %p137 = scmp.ne.s32.totalorder %s129, %s131
      %p138 = scmp.eq.s32.totalorder %s22, 15
      %p139 = por %p137, %p138
      %p140 = scmp.ne.s32.totalorder %s131, %s132
      %p141 = scmp.eq.s32.totalorder %s22, 0
      %p142 = por %p140, %p141
      %p143 = scmp.ne.s32.totalorder %s131, %s132
      %p144 = scmp.eq.s32.totalorder %s23, 15
      %p145 = por %p143, %p144
      %p147 = scmp.ne.s32.totalorder %s132, %s146
      %p148 = scmp.eq.s32.totalorder %s23, 0
      %p149 = por %p147, %p148
      %s151 = sadd.s32 %s150, 1
      %p154 = scmp.eq.s32.totalorder %s17, 15
      %p155 = scmp.ne.s32.totalorder %s150, %s152
      %p156 = scmp.eq.s32.totalorder %s17, 0
      %p157 = por %p155, %p156
      %p158 = scmp.ne.s32.totalorder %s150, %s152
      %p159 = scmp.eq.s32.totalorder %s22, 15
      %p160 = por %p158, %p159
      %p161 = scmp.ne.s32.totalorder %s152, %s153
      %p162 = scmp.eq.s32.totalorder %s22, 0
      %p163 = por %p161, %p162
      %p164 = scmp.ne.s32.totalorder %s152, %s153
      %p165 = scmp.eq.s32.totalorder %s23, 15
      %p166 = por %p164, %p165
      %p168 = scmp.ne.s32.totalorder %s153, %s167
      %p169 = scmp.eq.s32.totalorder %s23, 0
      %p170 = por %p168, %p169
      %s171 = ssub.s32 %s24, %s43
      %s172 = ssub.s32 %s25, %s39
      %s173 = sor.u32 %s171, %s172
      %p174 = scmp.eq.s32.totalorder %s173, 0
      %s176 = sadd.s32 %s175, 1
      %s177 = scalar_select %p174, %s175, %s176
      %p180 = pneg %p174
      %p181 = scmp.eq.s32.totalorder %s17, 15
      %p182 = por %p180, %p181
      %p183 = scmp.ne.s32.totalorder %s175, %s178
      %p184 = scmp.eq.s32.totalorder %s17, 0
      %p185 = por %p183, %p184
      %p186 = scmp.ne.s32.totalorder %s175, %s178
      %p187 = scmp.eq.s32.totalorder %s22, 15
      %p188 = por %p186, %p187
      %p189 = scmp.ne.s32.totalorder %s178, %s179
      %p190 = scmp.eq.s32.totalorder %s22, 0
      %p191 = por %p189, %p190
      %p192 = scmp.ne.s32.totalorder %s178, %s179
      %p193 = scmp.eq.s32.totalorder %s23, 15
      %p194 = por %p192, %p193
      %p196 = scmp.ne.s32.totalorder %s179, %s195
      %p197 = scmp.eq.s32.totalorder %s23, 0
      %p198 = por %p196, %p197
      %p199 = scmp.le.s32.totalorder 1, %s17
      %p200 = scmp.lt.s32.totalorder %s17, 17
      %p201 = pnand %p199, %p200
      %p202 = pneg %p201
      // Predicated region
      $region9: #{tpu_custom_call.1} parent=5 // pred_check
        _
      $region10: #{tpu_custom_call.1} parent=5 // pred_check_branch
        %204 = sbr.rel (%p201) target = $region12
      $region11: #{tpu_custom_call.1} parent=5 // pred_region
        %s205 = ssub.s32 %s17, 1
        // Predicated region
        $region13: #{tpu_custom_call.1} parent=11 // pred_check
          %p206 = pneg %p121
        $region14: #{tpu_custom_call.1} parent=11 // pred_check_branch
          %208 = sbr.rel (%p206) target = $region16
        $region15: #{tpu_custom_call.1} parent=11 // pred_region
          _
        $region16: #{tpu_custom_call.1} parent=11 // pred_fallthru
          _
        // Predicated region
        $region17: #{tpu_custom_call.1} parent=11 // pred_check
          %p209 = pneg %p142
        $region18: #{tpu_custom_call.1} parent=11 // pred_check_branch
          %211 = sbr.rel (%p209) target = $region20
        $region19: #{tpu_custom_call.1} parent=11 // pred_region
          _
        $region20: #{tpu_custom_call.1} parent=11 // pred_fallthru
          _
        // Predicated region
        $region21: #{tpu_custom_call.1} parent=11 // pred_check
          %p212 = pneg %p163
        $region22: #{tpu_custom_call.1} parent=11 // pred_check_branch
          %214 = sbr.rel (%p212) target = $region24
        $region23: #{tpu_custom_call.1} parent=11 // pred_region
          _
        $region24: #{tpu_custom_call.1} parent=11 // pred_fallthru
          _
      $region12: #{tpu_custom_call.1} parent=5 // pred_fallthru
        _
      %p215 = scmp.lt.s32.totalorder %s17, 16
      // Predicated region
      $region25: #{tpu_custom_call.1} parent=5 // pred_check
        %p216 = pneg %p215
      $region26: #{tpu_custom_call.1} parent=5 // pred_check_branch
        %218 = sbr.rel (%p216) target = $region28
      $region27: #{tpu_custom_call.1} parent=5 // pred_region
        // Predicated region
        $region29: #{tpu_custom_call.1} parent=27 // pred_check
          %p219 = pneg %p62
        $region30: #{tpu_custom_call.1} parent=27 // pred_check_branch
          %221 = sbr.rel (%p219) target = $region32
        $region31: #{tpu_custom_call.1} parent=27 // pred_region
          %s222 = sand.u32 %s52, 1
          %s223 = scalar_lea.sflag [#allocation3], %s222
          %s224 = sand.u32 %s52, 1
          %s225 = smul.addr %s224, 4
          %s226 = scalar_lea.vmem [#allocation2], %s225
          %s227 = smul.u32 %s25, 4
          %s228 = sadd.s32 %s227, %s26
          %s230 = ssub.s32 64, 64
          %231 = vsyncadd %s223, %s230
          %s232 = smul.addr %s24, 8
          %s233 = sadd.s32 %s228, %s232
          %s234 = smul.addr %s233, 64
          %s235 = scalar_lea.hbm %s0, %s234
          %s237 = sshll.u32 %s226, 4
          %s238 = int_to_ptr.vmem [resolvable:$true] %s237
          %240 = dma.hbm_to_vmem [thread:$0]  %s235, 64, %s238, %s223
        $region32: #{tpu_custom_call.1} parent=27 // pred_fallthru
          _
        // Predicated region
        $region33: #{tpu_custom_call.1} parent=27 // pred_check
          %p241 = pneg %p94
        $region34: #{tpu_custom_call.1} parent=27 // pred_check_branch
          %243 = sbr.rel (%p241) target = $region36
        $region35: #{tpu_custom_call.1} parent=27 // pred_region
          %s244 = sand.u32 %s84, 1
          %s245 = scalar_lea.sflag [#allocation5], %s244
          %s246 = sand.u32 %s84, 1
          %s247 = smul.addr %s246, 4
          %s248 = scalar_lea.vmem [#allocation4], %s247
          %s249 = smul.u32 %s25, 4
          %s250 = sadd.s32 %s249, %s26
          %s252 = ssub.s32 64, 64
          %253 = vsyncadd %s245, %s252
          %s254 = smul.addr %s24, 8
          %s255 = sadd.s32 %s250, %s254
          %s256 = smul.addr %s255, 64
          %s257 = scalar_lea.hbm %s1, %s256
          %s259 = sshll.u32 %s248, 4
          %s260 = int_to_ptr.vmem [resolvable:$true] %s259
          %262 = dma.hbm_to_vmem [thread:$0]  %s257, 64, %s260, %s245
        $region36: #{tpu_custom_call.1} parent=27 // pred_fallthru
          _
      $region28: #{tpu_custom_call.1} parent=5 // pred_fallthru
        _
      %p263 = scmp.le.s32.totalorder 1, %s17
      %p264 = scmp.lt.s32.totalorder %s17, 17
      %p265 = pnand %p263, %p264
      %p266 = pneg %p265
      // Predicated region
      $region37: #{tpu_custom_call.1} parent=5 // pred_check
        _
      $region38: #{tpu_custom_call.1} parent=5 // pred_check_branch
        %268 = sbr.rel (%p265) target = $region40
      $region39: #{tpu_custom_call.1} parent=5 // pred_region
        %s269 = ssub.s32 %s17, 1
        %s270 = sand.u32 %s55, 1
        %s271 = scalar_lea.sflag [#allocation3], %s270
        %s272 = sand.u32 %s55, 1
        %s273 = smul.addr %s272, 4
        %s274 = scalar_lea.vmem [#allocation2], %s273
        // Predicated region
        $region41: #{tpu_custom_call.1} parent=39 // pred_check
          %p275 = pneg %p68
        $region42: #{tpu_custom_call.1} parent=39 // pred_check_branch
          %277 = sbr.rel (%p275) target = $region44
        $region43: #{tpu_custom_call.1} parent=39 // pred_region
          %278 = dma.done %s271, 64
        $region44: #{tpu_custom_call.1} parent=39 // pred_fallthru
          _
        %s279 = sand.u32 %s87, 1
        %s280 = scalar_lea.sflag [#allocation5], %s279
        %s281 = sand.u32 %s87, 1
        %s282 = smul.addr %s281, 4
        %s283 = scalar_lea.vmem [#allocation4], %s282
        // Predicated region
        $region45: #{tpu_custom_call.1} parent=39 // pred_check
          %p284 = pneg %p100
        $region46: #{tpu_custom_call.1} parent=39 // pred_check_branch
          %286 = sbr.rel (%p284) target = $region48
        $region47: #{tpu_custom_call.1} parent=39 // pred_region
          %287 = dma.done %s280, 64
        $region48: #{tpu_custom_call.1} parent=39 // pred_fallthru
          _
        %s288 = sand.u32 %s55, 1
        %s289 = scalar_lea.sflag [#allocation3], %s288
        %s290 = sand.u32 %s55, 1
        %s291 = smul.addr %s290, 4
        %s292 = scalar_lea.vmem [#allocation2], %s291
        %p293 = pneg %p68
        %p294 = pneg %p65
        %s295 = sand.u32 %s87, 1
        %s296 = scalar_lea.sflag [#allocation5], %s295
        %s297 = sand.u32 %s87, 1
        %s298 = smul.addr %s297, 4
        %s299 = scalar_lea.vmem [#allocation4], %s298
        %p300 = pneg %p100
        %p301 = pneg %p97
        %p302 = pneg %p121
        %p303 = pneg %p118
        %p304 = pneg %p142
        %p305 = pneg %p139
        %p306 = pneg %p163
        %p307 = pneg %p160
        %p308 = pneg %p191
        %p309 = pneg %p188
        %p310 = scmp.lt.s32.totalorder %s27, 1
        %s311 = scalar_select %p310, %s27, 1
        %p312 = scmp.lt.s32.totalorder %s28, 1
        %s313 = scalar_select %p312, %s28, 1
        %s314 = smul.addr %s313, 2
        %s315 = smul.addr %s311, 4
        %s316 = sadd.s32 %s314, %s315
        %s317 = smul.addr %s316, 8
        %s318 = scalar_lea.vmem %s5, %s317
        %s319 = smul.u32 %s28, 4
        %s320 = sadd.s32 %s319, %s29
        %s321 = smul.u32 %s28, 4
        %s322 = sadd.s32 %s321, %s29
        %p323 = scmp.lt.s32.totalorder %s27, 1
        %s324 = scalar_select %p323, %s27, 1
        %p325 = scmp.lt.s32.totalorder %s28, 1
        %s326 = scalar_select %p325, %s28, 1
        %s327 = smul.addr %s326, 2
        %s328 = smul.addr %s324, 4
        %s329 = sadd.s32 %s327, %s328
        %s330 = smul.addr %s329, 8
        %s331 = scalar_lea.vmem %s5, %s330
        %v332 = vld [vmem:[%s274] sm:$0xf]
        %v333 = vld [vmem:[%s283] sm:$0xf]
        %v334 = vld [vmem:[%s2] sm:$0xff]
        %v335 = vld [vmem:[%s2 + $0x8] sm:$0xff]
        %v336 = vld [vmem:[%s3] sm:$0xff]
        %v337 = vld [vmem:[%s3 + $0x8] sm:$0xff]
        %vm338 = vcmask 31744
        %v340 = vsel %vm338, %v336, 0
        %v343 = vsel %vm338, %v337, 0
        %vm345 = vcmask 1043456
        %v347 = vsel %vm345, %v333, 0
        %349 = vmatprep.subr.mxu0 0.0
        %350 = vmatpush1.msra.mxu0 %v347
        %351 = vmatprep.subr.mxu0 0.0
        %352 = vmatpush1.msra.mxu0 0.0
        %353 = vmatprep.subr.mxu0 0.0
        %354 = vmatpush1.msra.mxu0 0.0
        %355 = vmatprep.subr.mxu0 0.0
        %356 = vmatpush1.msra.mxu0 0.0
        %357 = vmatprep.subr.mxu0 0.0
        %358 = vmatpush1.msra.mxu0 0.0
        %359 = vmatprep.subr.mxu0 0.0
        %360 = vmatpush1.msra.mxu0 0.0
        %361 = vmatprep.subr.mxu0 0.0
        %362 = vmatpush1.msra.mxu0 0.0
        %363 = vmatprep.subr.mxu0 0.0
        %364 = vmatpush1.msra.mxu0 0.0
        %365 = vmatprep.subr.mxu0 0.0
        %366 = vmatpush1.msra.mxu0 0.0
        %367 = vmatprep.subr.mxu0 0.0
        %368 = vmatpush1.msra.mxu0 0.0
        %369 = vmatprep.subr.mxu0 0.0
        %370 = vmatpush1.msra.mxu0 0.0
        %371 = vmatprep.subr.mxu0 0.0
        %372 = vmatpush1.msra.mxu0 0.0
        %373 = vmatprep.subr.mxu0 0.0
        %374 = vmatpush1.msra.mxu0 0.0
        %375 = vmatprep.subr.mxu0 0.0
        %376 = vmatpush1.msra.mxu0 0.0
        %377 = vmatprep.subr.mxu0 0.0
        %378 = vmatpush1.msra.mxu0 0.0
        %379 = vmatprep.subr.mxu0 0.0
        %380 = vmatpush1.msra.mxu0 0.0
        %381 = vmatprep.subr.mxu0 0.0
        %382 = vmatpush1.msra.mxu0 0.0
        %383 = vmatprep.subr.mxu0 0.0
        %384 = vmatpush1.msra.mxu0 0.0
        %385 = vmatprep.subr.mxu0 0.0
        %386 = vmatpush1.msra.mxu0 0.0
        %387 = vmatprep.subr.mxu0 0.0
        %388 = vmatpush1.msra.mxu0 0.0
        %389 = vmatprep.subr.mxu0 0.0
        %390 = vmatpush1.msra.mxu0 0.0
        %391 = vmatprep.subr.mxu0 0.0
        %392 = vmatpush1.msra.mxu0 0.0
        %393 = vmatprep.subr.mxu0 0.0
        %394 = vmatpush1.msra.mxu0 0.0
        %395 = vmatprep.subr.mxu0 0.0
        %396 = vmatpush1.msra.mxu0 0.0
        %397 = vmatprep.subr.mxu0 0.0
        %398 = vmatpush1.msra.mxu0 0.0
        %399 = vmatprep.subr.mxu0 0.0
        %400 = vmatpush1.msra.mxu0 0.0
        %401 = vmatprep.subr.mxu0 0.0
        %402 = vmatpush1.msra.mxu0 0.0
        %403 = vmatprep.subr.mxu0 0.0
        %404 = vmatpush1.msra.mxu0 0.0
        %405 = vmatprep.subr.mxu0 0.0
        %406 = vmatpush1.msra.mxu0 0.0
        %407 = vmatprep.subr.mxu0 0.0
        %408 = vmatpush1.msra.mxu0 0.0
        %409 = vmatprep.subr.mxu0 0.0
        %410 = vmatpush1.msra.mxu0 0.0
        %411 = vmatprep.subr.mxu0 0.0
        %412 = vmatpush1.msra.mxu0 0.0
        %413 = vmatprep.mubr.f32.mxu0 0.0
        %414 = vmatmul.mubr.f32.gmra.mrb[0].mxu0 %v340
        %v415 = vpop.f32.mrb[0].mxu0
        %v416 = vadd.f32 0.0, %v415
        %v417 = vpop.f32.mrb[0].mxu0
        %418 = vmatprep.mubr.f32.mxu0 0.0
        %419 = vmatmul.mubr.f32.gmra.mrb[0].mxu0 %v343
        %v420 = vpop.f32.mrb[0].mxu0
        %v421 = vadd.f32 0.0, %v420
        %v422 = vpop.f32.mrb[0].mxu0
        %423 = vdwg.mxu0
        %v425 = vsel %vm338, %v334, 0
        %v428 = vsel %vm338, %v335, 0
        %v431 = vsel %vm345, %v332, 0
        %433 = vmatprep.subr.mxu0 0.0
        %434 = vmatpush1.msra.mxu0 %v431
        %435 = vmatprep.subr.mxu0 0.0
        %436 = vmatpush1.msra.mxu0 0.0
        %437 = vmatprep.subr.mxu0 0.0
        %438 = vmatpush1.msra.mxu0 0.0
        %439 = vmatprep.subr.mxu0 0.0
        %440 = vmatpush1.msra.mxu0 0.0
        %441 = vmatprep.subr.mxu0 0.0
        %442 = vmatpush1.msra.mxu0 0.0
        %443 = vmatprep.subr.mxu0 0.0
        %444 = vmatpush1.msra.mxu0 0.0
        %445 = vmatprep.subr.mxu0 0.0
        %446 = vmatpush1.msra.mxu0 0.0
        %447 = vmatprep.subr.mxu0 0.0
        %448 = vmatpush1.msra.mxu0 0.0
        %449 = vmatprep.subr.mxu0 0.0
        %450 = vmatpush1.msra.mxu0 0.0
        %451 = vmatprep.subr.mxu0 0.0
        %452 = vmatpush1.msra.mxu0 0.0
        %453 = vmatprep.subr.mxu0 0.0
        %454 = vmatpush1.msra.mxu0 0.0
        %455 = vmatprep.subr.mxu0 0.0
        %456 = vmatpush1.msra.mxu0 0.0
        %457 = vmatprep.subr.mxu0 0.0
        %458 = vmatpush1.msra.mxu0 0.0
        %459 = vmatprep.subr.mxu0 0.0
        %460 = vmatpush1.msra.mxu0 0.0
        %461 = vmatprep.subr.mxu0 0.0
        %462 = vmatpush1.msra.mxu0 0.0
        %463 = vmatprep.subr.mxu0 0.0
        %464 = vmatpush1.msra.mxu0 0.0
        %465 = vmatprep.subr.mxu0 0.0
        %466 = vmatpush1.msra.mxu0 0.0
        %467 = vmatprep.subr.mxu0 0.0
        %468 = vmatpush1.msra.mxu0 0.0
        %469 = vmatprep.subr.mxu0 0.0
        %470 = vmatpush1.msra.mxu0 0.0
        %471 = vmatprep.subr.mxu0 0.0
        %472 = vmatpush1.msra.mxu0 0.0
        %473 = vmatprep.subr.mxu0 0.0
        %474 = vmatpush1.msra.mxu0 0.0
        %475 = vmatprep.subr.mxu0 0.0
        %476 = vmatpush1.msra.mxu0 0.0
        %477 = vmatprep.subr.mxu0 0.0
        %478 = vmatpush1.msra.mxu0 0.0
        %479 = vmatprep.subr.mxu0 0.0
        %480 = vmatpush1.msra.mxu0 0.0
        %481 = vmatprep.subr.mxu0 0.0
        %482 = vmatpush1.msra.mxu0 0.0
        %483 = vmatprep.subr.mxu0 0.0
        %484 = vmatpush1.msra.mxu0 0.0
        %485 = vmatprep.subr.mxu0 0.0
        %486 = vmatpush1.msra.mxu0 0.0
        %487 = vmatprep.subr.mxu0 0.0
        %488 = vmatpush1.msra.mxu0 0.0
        %489 = vmatprep.subr.mxu0 0.0
        %490 = vmatpush1.msra.mxu0 0.0
        %491 = vmatprep.subr.mxu0 0.0
        %492 = vmatpush1.msra.mxu0 0.0
        %493 = vmatprep.subr.mxu0 0.0
        %494 = vmatpush1.msra.mxu0 0.0
        %495 = vmatprep.subr.mxu0 0.0
        %496 = vmatpush1.msra.mxu0 0.0
        %497 = vmatprep.mubr.f32.mxu0 0.0
        %498 = vmatmul.mubr.f32.gmra.mrb[0].mxu0 %v425
        %v499 = vpop.f32.mrb[0].mxu0
        %v500 = vadd.f32 %v416, %v499
        %v501 = vpop.f32.mrb[0].mxu0
        %502 = vmatprep.mubr.f32.mxu0 0.0
        %503 = vmatmul.mubr.f32.gmra.mrb[0].mxu0 %v428
        %v504 = vpop.f32.mrb[0].mxu0
        %v505 = vadd.f32 %v421, %v504
        %v506 = vpop.f32.mrb[0].mxu0
        %507 = vdwg.mxu0
        %v508 = vld [vmem:[%s4] sm:$0xff]
        %v509 = vld [vmem:[%s4 + $0x8] sm:$0xff]
        %511 = vset.pattern.permute.xlu0 0
        %512 = vperm.xlu0 %511, %v508
        %v513 = vpop.permute.xlu0 %512
        %516 = vset.pattern.permute.xlu0 0
        %517 = vperm.xlu0 %516, %v509
        %v518 = vpop.permute.xlu0 %517
        %v520 = vadd.f32 %v500, %v513
        %v521 = vadd.f32 %v505, %v518
        %v522 = vmax.f32 %v520, 0.0
        %v523 = vmax.f32 %v521, 0.0
        %524 = vadd.xlane.f32.xlu0 %v522
        %v525 = vpop.xlane.xlu0 %524
        %526 = vadd.xlane.f32.xlu0 %v523
        %v527 = vpop.xlane.xlu0 %526
        %p528 = scmp.eq.s32.totalorder %s29, 0
        // Predicated region
        $region49: #{tpu_custom_call.1} parent=39 // pred_check
          %p529 = pneg %p528
        $region50: #{tpu_custom_call.1} parent=39 // pred_check_branch
          %531 = sbr.rel (%p529) target = $region52
        $region51: #{tpu_custom_call.1} parent=39 // pred_region
          %vm532 = vcmask 7168
          %533 = vst.msk [vmem:[%s331] sm:$0xff] %vm532, 0.0
          %534 = vst.msk [vmem:[%s331 + $0x8] sm:$0xff] %vm532, 0.0
        $region52: #{tpu_custom_call.1} parent=39 // pred_fallthru
          _
        %v535 = vld [vmem:[%s331] sm:$0xff]
        %v536 = vld [vmem:[%s331 + $0x8] sm:$0xff]
        %v537 = vadd.f32 %v535, %v525
        %v538 = vadd.f32 %v536, %v527
        %vm539 = vcmask 7168
        %540 = vst.msk [vmem:[%s331] sm:$0xff] %vm539, %v537
        %541 = vst.msk [vmem:[%s331 + $0x8] sm:$0xff] %vm539, %v538
        %p542 = scmp.lt.s32.totalorder %s27, 1
        %s543 = scalar_select %p542, %s27, 1
        %p544 = scmp.lt.s32.totalorder %s28, 1
        %s545 = scalar_select %p544, %s28, 1
        %s546 = smul.addr %s545, 2
        %s547 = smul.addr %s543, 4
        %s548 = sadd.s32 %s546, %s547
        %s549 = smul.addr %s548, 8
        %s550 = scalar_lea.vmem %s5, %s549
        // Predicated region
        $region53: #{tpu_custom_call.1} parent=39 // pred_check
          %p551 = pneg %p188
        $region54: #{tpu_custom_call.1} parent=39 // pred_check_branch
          %553 = sbr.rel (%p551) target = $region56
        $region55: #{tpu_custom_call.1} parent=39 // pred_region
          _
        $region56: #{tpu_custom_call.1} parent=39 // pred_fallthru
          _
      $region40: #{tpu_custom_call.1} parent=5 // pred_fallthru
        _
      %p554 = scmp.le.s32.totalorder 2, %s17
      // Predicated region
      $region57: #{tpu_custom_call.1} parent=5 // pred_check
        %p555 = pneg %p554
      $region58: #{tpu_custom_call.1} parent=5 // pred_check_branch
        %557 = sbr.rel (%p555) target = $region60
      $region59: #{tpu_custom_call.1} parent=5 // pred_region
        %s558 = ssub.s32 %s17, 2
        // Predicated region
        $region61: #{tpu_custom_call.1} parent=59 // pred_check
          %p559 = pneg %p194
        $region62: #{tpu_custom_call.1} parent=59 // pred_check_branch
          %561 = sbr.rel (%p559) target = $region64
        $region63: #{tpu_custom_call.1} parent=59 // pred_region
          %p562 = scmp.lt.s32.totalorder %s30, 1
          %s563 = scalar_select %p562, %s30, 1
          %p564 = scmp.lt.s32.totalorder %s31, 1
          %s565 = scalar_select %p564, %s31, 1
          %s566 = smul.addr %s565, 2
          %s567 = smul.addr %s563, 4
          %s568 = sadd.s32 %s566, %s567
          %s569 = smul.addr %s568, 8
          %s570 = scalar_lea.vmem %s5, %s569
        $region64: #{tpu_custom_call.1} parent=59 // pred_fallthru
          _
      $region60: #{tpu_custom_call.1} parent=5 // pred_fallthru
        _
    $region6: #{tpu_custom_call.1} parent=1 // loop_footer
      %s21 = sadd.s32 1, %s17
    $region7: #{tpu_custom_call.1} parent=1 // loop_footer_branch
      %16 = sbr.rel target = $region3
    $region8: #{tpu_custom_call.1} parent=1 // loop_exit
      _
    %571 = vsyncpa [#allocation3], 1
    %s572 = scalar_lea.sflag [#allocation3], 1
    %573 = vsyncpa %s572, 1
    %574 = vsyncpa [#allocation5], 1
    %s575 = scalar_lea.sflag [#allocation5], 1
    %576 = vsyncpa %s575, 1

</llo_original>
